<compile_context>
chip_gen: v5e
topology: v5e:2x2
jax: 0.10.0
libtpu: 0.0.40
codegen_flags: <defaults>
</compile_context>

<pallas_src>
import functools

import jax
import jax.numpy as jnp
from jax.experimental import pallas as pl
from jax.experimental.pallas import tpu as pltpu

INIT_VALUE = 1.0
LR_MULT = 1.0

LANES = 128
# ~4 MiB per block buffer; with double-buffered input + output that is ~16 MiB
# of VMEM.  Gains from bigger blocks taper after ~1-2 MiB; 4 MiB is a good
# unified choice across v5e/v6e/v7x once vmem_limit_bytes is raised.
TARGET_BLOCK_BYTES = 4 << 20
VMEM_LIMIT_BYTES = 48 << 20
# Below this many elements, skip Pallas and let XLA's fused elementwise run.
DEFAULT_MIN_PALLAS_ELEMS = 1 << 18

_CORE_PARALLEL_FAILED = False  # cached after the first lowering rejection


def _scale_kernel(scale_ref, x_ref, o_ref, *, lr_mult):
    # scale_ref: (1,) f32 in SMEM.  x_ref / o_ref: lane-dense VMEM tiles
    # (either (block_rows, 128) or a flat (block_elems,) for the ragged path).
    s = jnp.abs(scale_ref[0] * jnp.float32(lr_mult))        # scalar unit, free
    # Multiply in the input dtype (bf16/f16 VALU on v6e/v7x; v5e promotes
    # internally).  Compute stays trivially hidden under DMA on all gens.
    o_ref[...] = x_ref[...] * s.astype(o_ref.dtype)


def _target_block_rows(dtype):
    """Rows of a (rows, 128) block holding ~TARGET_BLOCK_BYTES of `dtype`."""
    itemsize = jnp.dtype(dtype).itemsize
    packing = max(1, 4 // itemsize)        # values packed per 32-bit sublane
    min_rows = 8 * packing                 # native second-minor tile height
    rows = max(min_rows, TARGET_BLOCK_BYTES // (LANES * itemsize))
    return (rows // min_rows) * min_rows


def _dimension_semantics_candidates():
    cands = []
    core_parallel = getattr(pltpu, "CORE_PARALLEL", None)
    if core_parallel is not None and not _CORE_PARALLEL_FAILED:
        cands.append((core_parallel,))     # v7x: split grid across both TCs
    cands.append(("parallel",))            # accepted on every generation
    return cands


def scale_layer(x, scale, *, lr_mult=LR_MULT, alias_input=False,
                min_pallas_elems=DEFAULT_MIN_PALLAS_ELEMS):
    """ScaleLayer.forward: x * abs(scale * lr_mult).

    x: any-shape array (NCHW here).  scale: (1,) float32 parameter.
    Output dtype follows x.dtype.
    """
    global _CORE_PARALLEL_FAILED

    orig_shape = x.shape
    dtype = x.dtype
    n = x.size

    # Small-tensor bailout: a pallas_call launch + single grid step costs more
    # than XLA's fused elementwise multiply for tiny tensors.
    if n == 0 or n < min_pallas_elems:
        s = jnp.abs(scale * jnp.float32(lr_mult))
        return x * s.astype(dtype)

    kernel = functools.partial(_scale_kernel, lr_mult=lr_mult)
    x_flat = jnp.ravel(x)  # contiguous -> free reshape

    if n % LANES == 0:
        # Lane-dense 2-D presentation: (rows, 128).
        rows = n // LANES
        block_rows = min(rows, _target_block_rows(dtype))  # full extent legal
        arr = x_flat.reshape(rows, LANES)
        block_shape = (block_rows, LANES)
        grid = (pl.cdiv(rows, block_rows),)
        index_map = lambda i: (i, 0)
    else:
        # Ragged path: no pad / slice HBM round-trips.  Block length is a
        # multiple of 128 (or the full extent), so the (8,128) rule holds even
        # though n is not a multiple of 128; Pallas copies only the valid
        # sub-range of the partial edge block and the kernel stays purely
        # elementwise, so garbage tail lanes never reach HBM.
        block_elems = min(n, _target_block_rows(dtype) * LANES)
        arr = x_flat
        block_shape = (block_elems,)
        grid = (pl.cdiv(n, block_elems),)
        index_map = lambda i: (i,)

    def run(dim_semantics):
        return pl.pallas_call(
            kernel,
            out_shape=jax.ShapeDtypeStruct(arr.shape, dtype),
            grid=grid,
            in_specs=[
                pl.BlockSpec(memory_space=pltpu.MemorySpace.SMEM),  # scale
                pl.BlockSpec(block_shape, index_map),
            ],
            out_specs=pl.BlockSpec(block_shape, index_map),
            compiler_params=pltpu.CompilerParams(
                dimension_semantics=dim_semantics,
                vmem_limit_bytes=VMEM_LIMIT_BYTES,
            ),
            input_output_aliases={1: 0} if alias_input else {},
        )(scale, arr)

    # Try CORE_PARALLEL first (engages both v7x TensorCores); fall back to
    # "parallel" if this chip / jax version rejects it.  The fallback is only
    # exercised in eager mode (inside jit, lowering errors surface at compile
    # time), which is how this wrapper is used here.
    candidates = _dimension_semantics_candidates()
    out = None
    for idx, sem in enumerate(candidates):
        try:
            out = run(sem)
            break
        except Exception:
            if len(candidates) > 1 and idx == 0:
                _CORE_PARALLEL_FAILED = True
                continue
            raise

    return out.reshape(orig_shape)


if __name__ == "__main__":
    key = jax.random.PRNGKey(0)
    x = jax.random.normal(key, (2, 4, 16, 16), dtype=jnp.float32)  # NCHW

    # Deterministic parameter init, matching nn.Parameter(full((1,), init/lr_mult)).
    scale_param = jnp.full((1,), INIT_VALUE / LR_MULT, dtype=jnp.float32)
    s_ref = jnp.abs(scale_param * LR_MULT)

    # 1) Force the Pallas path at this small demo size (default bailout would
    #    otherwise route it through plain XLA). n = 2048 -> (16, 128) 2-D path.
    out = jax.block_until_ready(scale_layer(x, scale_param, min_pallas_elems=0))
    ref = x * s_ref
    assert out.shape == x.shape and out.dtype == x.dtype
    assert jnp.allclose(out, ref, atol=1e-6, rtol=1e-6)

    # 2) Ragged size (not a multiple of 128): exercises the pad-free 1-D path.
    xr = jax.random.normal(jax.random.PRNGKey(0), (2, 3, 13, 13), dtype=jnp.float32)
    outr = jax.block_until_ready(scale_layer(xr, scale_param, min_pallas_elems=0))
    assert outr.shape == xr.shape
    assert jnp.allclose(outr, xr * s_ref, atol=1e-6, rtol=1e-6)

    # 3) bf16 input: exercises dtype-aware block sizing + in-dtype multiply.
    xb = x.astype(jnp.bfloat16)
    outb = jax.block_until_ready(scale_layer(xb, scale_param, min_pallas_elems=0))
    refb = xb * s_ref.astype(jnp.bfloat16)
    assert outb.dtype == jnp.bfloat16
    assert jnp.allclose(outb.astype(jnp.float32), refb.astype(jnp.float32),
                        atol=1e-2, rtol=1e-2)

    # 4) Default small-size bailout path (plain XLA), same semantics.
    out_small = jax.block_until_ready(scale_layer(x, scale_param))
    assert jnp.allclose(out_small, ref, atol=1e-6, rtol=1e-6)

    print("KERNEL_OK")
</pallas_src>

<mosaic_0001>
module attributes {stable_mosaic.version = 11 : i64} {
  func.func @_scale_kernel(%arg0: i32, %arg1: memref<1xf32, #tpu.memory_space<smem>>, %arg2: memref<16x128xf32, #tpu.memory_space<vmem>>, %arg3: memref<16x128xf32, #tpu.memory_space<vmem>>) attributes {dimension_semantics = [#tpu.dimension_semantics<core_parallel>], iteration_bounds = array<i64: 1>, scalar_prefetch = 0 : i64, scratch_operands = 0 : i64, tpu.core_type = #tpu.core_type<tc>, window_params = [{transform_indices = @transform_0, window_bounds = array<i64: 1>}, {transform_indices = @transform_1, window_bounds = array<i64: 16, 128>}, {transform_indices = @transform_2, window_bounds = array<i64: 16, 128>}]} {
    %c0 = arith.constant 0 : index
    %0 = memref.load %arg1[%c0] : memref<1xf32, #tpu.memory_space<smem>>
    %cst = arith.constant 1.000000e+00 : f32
    %1 = arith.mulf %0, %cst : f32
    %2 = math.absf %1 : f32
    %c0_0 = arith.constant 0 : index
    %c0_1 = arith.constant 0 : index
    %3 = vector.load %arg2[%c0_0, %c0_1] : memref<16x128xf32, #tpu.memory_space<vmem>>, vector<16x128xf32>
    %4 = vector.broadcast %2 : f32 to vector<16x128xf32>
    %5 = arith.mulf %3, %4 : vector<16x128xf32>
    %c0_2 = arith.constant 0 : index
    %c0_3 = arith.constant 0 : index
    %6 = vector.load %arg3[%c0_2, %c0_3] : memref<16x128xf32, #tpu.memory_space<vmem>>, vector<16x128xf32>
    tpu.vector_store %arg3[%c0_2, %c0_3], %5 {strides = array<i32>} : memref<16x128xf32, #tpu.memory_space<vmem>>, vector<16x128xf32>,
    return
  }
  func.func @transform_0(%arg0: i32) -> i32 {
    %c0_i32 = arith.constant 0 : i32
    %c0_i32_0 = arith.constant 0 : i32
    return %c0_i32 : i32
  }
  func.func @transform_1(%arg0: i32) -> (i32, i32) {
    %c0_i32 = arith.constant 0 : i32
    %c0_i32_0 = arith.constant 0 : i32
    return %arg0, %c0_i32 : i32, i32
  }
  func.func @transform_2(%arg0: i32) -> (i32, i32) {
    %c0_i32 = arith.constant 0 : i32
    %c0_i32_0 = arith.constant 0 : i32
    return %arg0, %c0_i32 : i32, i32
  }
}

module attributes {stable_mosaic.version = 11 : i64} {
  func.func @_scale_kernel(%arg0: i32, %arg1: memref<1xf32, #tpu.memory_space<smem>>, %arg2: memref<16x128xf32, #tpu.memory_space<vmem>>, %arg3: memref<16x128xf32, #tpu.memory_space<vmem>>) attributes {dimension_semantics = [#tpu.dimension_semantics<parallel>], iteration_bounds = array<i64: 1>, scalar_prefetch = 0 : i64, scratch_operands = 0 : i64, tpu.core_type = #tpu.core_type<tc>, window_params = [{transform_indices = @transform_0, window_bounds = array<i64: 1>}, {transform_indices = @transform_1, window_bounds = array<i64: 16, 128>}, {transform_indices = @transform_2, window_bounds = array<i64: 16, 128>}]} {
    %c0 = arith.constant 0 : index
    %0 = memref.load %arg1[%c0] : memref<1xf32, #tpu.memory_space<smem>>
    %cst = arith.constant 1.000000e+00 : f32
    %1 = arith.mulf %0, %cst : f32
    %2 = math.absf %1 : f32
    %c0_0 = arith.constant 0 : index
    %c0_1 = arith.constant 0 : index
    %3 = vector.load %arg2[%c0_0, %c0_1] : memref<16x128xf32, #tpu.memory_space<vmem>>, vector<16x128xf32>
    %4 = vector.broadcast %2 : f32 to vector<16x128xf32>
    %5 = arith.mulf %3, %4 : vector<16x128xf32>
    %c0_2 = arith.constant 0 : index
    %c0_3 = arith.constant 0 : index
    %6 = vector.load %arg3[%c0_2, %c0_3] : memref<16x128xf32, #tpu.memory_space<vmem>>, vector<16x128xf32>
    tpu.vector_store %arg3[%c0_2, %c0_3], %5 {strides = array<i32>} : memref<16x128xf32, #tpu.memory_space<vmem>>, vector<16x128xf32>,
    return
  }
  func.func @transform_0(%arg0: i32) -> i32 {
    %c0_i32 = arith.constant 0 : i32
    %c0_i32_0 = arith.constant 0 : i32
    return %c0_i32 : i32
  }
  func.func @transform_1(%arg0: i32) -> (i32, i32) {
    %c0_i32 = arith.constant 0 : i32
    %c0_i32_0 = arith.constant 0 : i32
    return %arg0, %c0_i32 : i32, i32
  }
  func.func @transform_2(%arg0: i32) -> (i32, i32) {
    %c0_i32 = arith.constant 0 : i32
    %c0_i32_0 = arith.constant 0 : i32
    return %arg0, %c0_i32 : i32, i32
  }
}

</mosaic_0001>

<llo_original>
// kernel: tpu_custom_call.1
$region0: #{tpu_custom_call.1}
  #allocation0 [shape = 'u32[]', space=smem, size = 0x4, offset = 0x4, fixed_abs, tag = 'smem constant byte address 0x4 - core index']
  #allocation1 [shape = 'u32[72,128]{1,0:T(1,128)}', space=vmem, size = 0x9000, scoped, tag = 'internal scratch']
  #allocation2 [shape = 'f32[1]{0:T(128)S(6)}', space=smem, size = 0x200, scoped, tag = 'scoped memory for tpu_custom_call.1']
  %s0 = inlined_call_operand.<no memory space> [shape: f32[1], index: 0, kind: input, shape index: {}]
  %s1 = inlined_call_operand.hbm [shape: f32[16,128], index: 1, kind: input, shape index: {}]
  %s2 = inlined_call_operand.hbm [shape: f32[16,128], index: 2, kind: output, shape index: {}]
  %s3 = sld [smem:[#allocation0]]
  $region22: #{tpu_custom_call.1} parent=0
    _
  %s5 = ssub.s32 1, %s3
  %s6 = scalar_select 0, %s5, %s3
  %7 = sst [smem:[#allocation2]] %s0
  $region1: #{tpu_custom_call.1} parent=0
    #allocation3 [shape = 'u8[8192]{0}', space=vmem, size = 0x2000, scoped, tag = 'input window, operand 1, single buffered']
    #allocation4 [shape = 's32[1]{0}', space=sflag, size = 0x4, scoped, tag = 'scoped memory for tpu_custom_call.1']
    #allocation5 [shape = 's32[1]{0}', space=sflag, size = 0x4, scoped, tag = 'scoped memory for tpu_custom_call.1']
    #allocation6 [shape = 'u8[8192]{0}', space=vmem, size = 0x2000, scoped, tag = 'output window, operand 0, single buffered']
    %8 = vsyncpa [#allocation4], 0
    %9 = vsyncpa [#allocation5], 0
    // Predicated region
    $region2: #{tpu_custom_call.1} parent=1 // pred_check
      _
    $region3: #{tpu_custom_call.1} parent=1 // pred_check_branch
      %11 = sbr.rel (0) target = $region5
    $region4: #{tpu_custom_call.1} parent=1 // pred_region
      _
    $region5: #{tpu_custom_call.1} parent=1 // pred_fallthru
      _
    // Predicated region
    $region6: #{tpu_custom_call.1} parent=1 // pred_check
      _
    $region7: #{tpu_custom_call.1} parent=1 // pred_check_branch
      %13 = sbr.rel (0) target = $region9
    $region8: #{tpu_custom_call.1} parent=1 // pred_region
      %s14 = smul.u32 2, %s6
      %16 = vsyncadd [#allocation4], 0
      %s17 = smul.addr %s14, 8
      %s18 = scalar_lea.hbm %s1, %s17
      %s19 = sshll.u32 %s18, 4
      %s20 = int_to_ptr.hbm [resolvable:$true] %s19
      %s21 = sshll.u32 [#allocation3], 4
      %s22 = int_to_ptr.vmem [resolvable:$true] %s21
      %27 = dma.hbm_to_vmem [thread:$0]  %s20, 256, %s22, [#allocation4], 128, 128, 8
    $region9: #{tpu_custom_call.1} parent=1 // pred_fallthru
      _
    // Predicated region
    $region10: #{tpu_custom_call.1} parent=1 // pred_check
      _
    $region11: #{tpu_custom_call.1} parent=1 // pred_check_branch
      %29 = sbr.rel (0) target = $region13
    $region12: #{tpu_custom_call.1} parent=1 // pred_region
      %31 = dma.done [#allocation4], 256
    $region13: #{tpu_custom_call.1} parent=1 // pred_fallthru
      _
    %s32 = smul.u32 2, %s6
    %s33 = smul.u32 2, %s6
    %s34 = sld [smem:[#allocation2]]
    %s35 = sand.u32 2147483647, %s34
    %v36 = vld [vmem:[#allocation3] sm:$0xff]
    %v37 = vld [vmem:[#allocation3 + $0x8] sm:$0xff]
    %v38 = vstv %s35
    %v39 = vmul.f32 %v36, %v38
    %v40 = vmul.f32 %v37, %v38
    %41 = vst [vmem:[#allocation6] sm:$0xff] %v39
    %42 = vst [vmem:[#allocation6 + $0x8] sm:$0xff] %v40
    // Predicated region
    $region14: #{tpu_custom_call.1} parent=1 // pred_check
      _
    $region15: #{tpu_custom_call.1} parent=1 // pred_check_branch
      %44 = sbr.rel (0) target = $region17
    $region16: #{tpu_custom_call.1} parent=1 // pred_region
      %s45 = smul.u32 2, %s6
      %47 = vsyncadd [#allocation5], 0
      %s48 = smul.addr %s45, 8
      %s49 = scalar_lea.hbm %s2, %s48
      %s50 = sshll.u32 [#allocation6], 4
      %s51 = int_to_ptr.vmem [resolvable:$true] %s50
      %s52 = sshll.u32 %s49, 4
      %s53 = int_to_ptr.hbm [resolvable:$true] %s52
      %58 = dma.vmem_to_hbm [thread:$0]  %s51, 256, %s53, [#allocation5], 128, 128, 8
    $region17: #{tpu_custom_call.1} parent=1 // pred_fallthru
      _
    // Predicated region
    $region18: #{tpu_custom_call.1} parent=1 // pred_check
      _
    $region19: #{tpu_custom_call.1} parent=1 // pred_check_branch
      %60 = sbr.rel (0) target = $region21
    $region20: #{tpu_custom_call.1} parent=1 // pred_region
      %62 = dma.done [#allocation5], 256
    $region21: #{tpu_custom_call.1} parent=1 // pred_fallthru
      _
    %63 = vsyncpa [#allocation4], 1
    %64 = vsyncpa [#allocation5], 1

// kernel: tpu_custom_call.1
$region0: #{tpu_custom_call.1}
  #allocation0 [shape = 'u32[]', space=smem, size = 0x4, offset = 0x4, fixed_abs, tag = 'smem constant byte address 0x4 - core index']
  #allocation1 [shape = 'u32[72,128]{1,0:T(1,128)}', space=vmem, size = 0x9000, scoped, tag = 'internal scratch']
  #allocation2 [shape = 'f32[1]{0:T(128)S(6)}', space=smem, size = 0x200, scoped, tag = 'scoped memory for tpu_custom_call.1']
  %s0 = inlined_call_operand.<no memory space> [shape: f32[1], index: 0, kind: input, shape index: {}]
  %s1 = inlined_call_operand.hbm [shape: f32[16,128], index: 1, kind: input, shape index: {}]
  %s2 = inlined_call_operand.hbm [shape: f32[16,128], index: 2, kind: output, shape index: {}]
  %s3 = sld [smem:[#allocation0]]
  $region22: #{tpu_custom_call.1} parent=0
    _
  %s5 = ssub.s32 1, %s3
  %s6 = scalar_select 0, %s5, %s3
  %7 = sst [smem:[#allocation2]] %s0
  $region1: #{tpu_custom_call.1} parent=0
    #allocation3 [shape = 'u8[8192]{0}', space=vmem, size = 0x2000, scoped, tag = 'input window, operand 1, single buffered']
    #allocation4 [shape = 's32[1]{0}', space=sflag, size = 0x4, scoped, tag = 'scoped memory for tpu_custom_call.1']
    #allocation5 [shape = 's32[1]{0}', space=sflag, size = 0x4, scoped, tag = 'scoped memory for tpu_custom_call.1']
    #allocation6 [shape = 'u8[8192]{0}', space=vmem, size = 0x2000, scoped, tag = 'output window, operand 0, single buffered']
    %8 = vsyncpa [#allocation4], 0
    %9 = vsyncpa [#allocation5], 0
    // Predicated region
    $region2: #{tpu_custom_call.1} parent=1 // pred_check
      _
    $region3: #{tpu_custom_call.1} parent=1 // pred_check_branch
      %11 = sbr.rel (0) target = $region5
    $region4: #{tpu_custom_call.1} parent=1 // pred_region
      _
    $region5: #{tpu_custom_call.1} parent=1 // pred_fallthru
      _
    // Predicated region
    $region6: #{tpu_custom_call.1} parent=1 // pred_check
      _
    $region7: #{tpu_custom_call.1} parent=1 // pred_check_branch
      %13 = sbr.rel (0) target = $region9
    $region8: #{tpu_custom_call.1} parent=1 // pred_region
      %15 = vsyncadd [#allocation4], 0
      %s16 = sshll.u32 %s1, 4
      %s17 = int_to_ptr.hbm [resolvable:$true] %s16
      %s18 = sshll.u32 [#allocation3], 4
      %s19 = int_to_ptr.vmem [resolvable:$true] %s18
      %24 = dma.hbm_to_vmem [thread:$0]  %s17, 256, %s19, [#allocation4], 128, 128, 8
    $region9: #{tpu_custom_call.1} parent=1 // pred_fallthru
      _
    // Predicated region
    $region10: #{tpu_custom_call.1} parent=1 // pred_check
      _
    $region11: #{tpu_custom_call.1} parent=1 // pred_check_branch
      %26 = sbr.rel (0) target = $region13
    $region12: #{tpu_custom_call.1} parent=1 // pred_region
      %28 = dma.done [#allocation4], 256
    $region13: #{tpu_custom_call.1} parent=1 // pred_fallthru
      _
    %s29 = sld [smem:[#allocation2]]
    %s30 = sand.u32 2147483647, %s29
    %v31 = vld [vmem:[#allocation3] sm:$0xff]
    %v32 = vld [vmem:[#allocation3 + $0x8] sm:$0xff]
    %v33 = vstv %s30
    %v34 = vmul.f32 %v31, %v33
    %v35 = vmul.f32 %v32, %v33
    %36 = vst [vmem:[#allocation6] sm:$0xff] %v34
    %37 = vst [vmem:[#allocation6 + $0x8] sm:$0xff] %v35
    // Predicated region
    $region14: #{tpu_custom_call.1} parent=1 // pred_check
      _
    $region15: #{tpu_custom_call.1} parent=1 // pred_check_branch
      %39 = sbr.rel (0) target = $region17
    $region16: #{tpu_custom_call.1} parent=1 // pred_region
      %41 = vsyncadd [#allocation5], 0
      %s42 = sshll.u32 [#allocation6], 4
      %s43 = int_to_ptr.vmem [resolvable:$true] %s42
      %s44 = sshll.u32 %s2, 4
      %s45 = int_to_ptr.hbm [resolvable:$true] %s44
      %50 = dma.vmem_to_hbm [thread:$0]  %s43, 256, %s45, [#allocation5], 128, 128, 8
    $region17: #{tpu_custom_call.1} parent=1 // pred_fallthru
      _
    // Predicated region
    $region18: #{tpu_custom_call.1} parent=1 // pred_check
      _
    $region19: #{tpu_custom_call.1} parent=1 // pred_check_branch
      %52 = sbr.rel (0) target = $region21
    $region20: #{tpu_custom_call.1} parent=1 // pred_region
      %54 = dma.done [#allocation5], 256
    $region21: #{tpu_custom_call.1} parent=1 // pred_fallthru
      _
    %55 = vsyncpa [#allocation4], 1
    %56 = vsyncpa [#allocation5], 1

</llo_original>
